<compile_context>
chip_gen: v5e
topology: v5e:2x2
jax: 0.10.0
libtpu: 0.0.40
codegen_flags: <defaults>
</compile_context>

<pallas_src>
import functools

import jax
import jax.numpy as jnp
from jax.experimental import pallas as pl
from jax.experimental.pallas import tpu as pltpu

_BN_EPS = 1e-5
_DEFAULT_VMEM_LIMIT = 48 * 1024 * 1024      # safe everywhere (v7x physical = 64 MiB)
_VMEM_LIMIT_CACHE = None


# ---------------------------------------------------------------------------
# small helpers
# ---------------------------------------------------------------------------
def _cdiv(a, b):
    return -(-a // b)


def _round_up(v, m):
    return ((v + m - 1) // m) * m


def _pad_channels(c):
    return 8 if c <= 8 else _round_up(c, 128)


def _pick_tiling(n_points, tile_rows):
    """Minimal-padding point tiling: nt tiles of T rows (T multiple of 8,
    T <= ~tile_rows, nt*T >= n_points)."""
    nt = _cdiv(n_points, max(int(tile_rows), 8))
    tile = _round_up(_cdiv(n_points, nt), 8)
    return nt, tile


def _vmem_limit_bytes():
    """Generation-aware VMEM budget (3/4 of physical, capped) with safe fallback."""
    global _VMEM_LIMIT_CACHE
    if _VMEM_LIMIT_CACHE is None:
        limit = _DEFAULT_VMEM_LIMIT
        try:
            cap = int(getattr(pltpu.get_tpu_info(), "vmem_capacity_bytes", 0) or 0)
            if cap > 0:
                limit = min(cap * 3 // 4, 100 * 1024 * 1024)
        except Exception:
            pass
        _VMEM_LIMIT_CACHE = limit
    return _VMEM_LIMIT_CACHE


def _compiler_params(dimension_semantics):
    return pltpu.CompilerParams(dimension_semantics=dimension_semantics,
                                vmem_limit_bytes=_vmem_limit_bytes())


# ---------------------------------------------------------------------------
# kernels
# ---------------------------------------------------------------------------
def _row_valid(tile, n_points):
    """(tile, 1) bool mask: True for rows that are real points of this batch."""
    j = pl.program_id(1)
    rows = j * tile + jax.lax.broadcasted_iota(jnp.int32, (tile, 1), 0)
    return rows < n_points


def _partial_stats(y):
    """(1, 2, C) per-tile [sum, sum-of-squares] of the f32 accumulator."""
    s = jnp.sum(y, axis=0, keepdims=True)
    ss = jnp.sum(y * y, axis=0, keepdims=True)
    return jnp.concatenate([s, ss], axis=0)[None]


def _l1_stats_kernel(x_ref, w1_ref, stats_ref):
    """Layer-1 first pass: y1 = x @ W1 on the MXU, emit only partial BN stats."""
    y = jnp.dot(x_ref[...].astype(w1_ref.dtype), w1_ref[...],
                preferred_element_type=jnp.float32)
    stats_ref[...] = _partial_stats(y)


def _l2_fused_kernel(x_ref, w1_ref, sc_ref, sh_ref, w2_ref, y_ref, stats_ref,
                     *, tile, n_points, masked):
    """Recompute y1 = x @ W1, apply folded BN1 + ReLU, y2 = h1 @ W2, emit stats."""
    y1 = jnp.dot(x_ref[...].astype(w1_ref.dtype), w1_ref[...],
                 preferred_element_type=jnp.float32)
    h = jnp.maximum(y1 * sc_ref[...] + sh_ref[...], 0.0)
    if masked:
        h = jnp.where(_row_valid(tile, n_points), h, 0.0)
    y = jnp.dot(h.astype(w2_ref.dtype), w2_ref[...],
                preferred_element_type=jnp.float32)
    y_ref[...] = y.astype(y_ref.dtype)
    stats_ref[...] = _partial_stats(y)


def _mid_fused_kernel(y_prev_ref, sc_ref, sh_ref, w_ref, y_ref, stats_ref,
                      *, tile, n_points, masked):
    """h = relu(folded-BN(y_prev)); y = h @ W; emit partial BN stats of y."""
    h = jnp.maximum(y_prev_ref[...] * sc_ref[...] + sh_ref[...], 0.0)
    if masked:
        h = jnp.where(_row_valid(tile, n_points), h, 0.0)
    y = jnp.dot(h.astype(w_ref.dtype), w_ref[...],
                preferred_element_type=jnp.float32)
    y_ref[...] = y.astype(y_ref.dtype)
    stats_ref[...] = _partial_stats(y)


def _final_fused_kernel(y_prev_ref, sc_ref, sh_ref, w_ref, out_ref,
                        *, tile, n_points, masked):
    """Layer 5 fused with the max-pool: h4 = relu(BN4(y_prev)); y5 = h4 @ W5;
    emit per-tile [sum, ssq, max, min] of the pre-BN y5 (y5 never hits HBM)."""
    h = jnp.maximum(y_prev_ref[...] * sc_ref[...] + sh_ref[...], 0.0)
    if masked:
        valid = _row_valid(tile, n_points)
        h = jnp.where(valid, h, 0.0)
    y = jnp.dot(h.astype(w_ref.dtype), w_ref[...],
                preferred_element_type=jnp.float32)
    if masked:
        y_mx = jnp.where(valid, y, -jnp.inf)
        y_mn = jnp.where(valid, y, jnp.inf)
    else:
        y_mx = y
        y_mn = y
    out_ref[...] = jnp.concatenate(
        [jnp.sum(y, axis=0, keepdims=True),
         jnp.sum(y * y, axis=0, keepdims=True),
         jnp.max(y_mx, axis=0, keepdims=True),
         jnp.min(y_mn, axis=0, keepdims=True)], axis=0)[None]


# ---------------------------------------------------------------------------
# pallas_call wrappers
# ---------------------------------------------------------------------------
def _call_layer1(x_flat, w1, batch, nt, tile):
    c_in = x_flat.shape[1]
    c_out = w1.shape[1]
    return pl.pallas_call(
        _l1_stats_kernel,
        grid=(batch, nt),
        in_specs=[
            pl.BlockSpec((tile, c_in), lambda b, j, nt=nt: (b * nt + j, 0)),
            pl.BlockSpec((c_in, c_out), lambda b, j: (0, 0)),     # weight resident
        ],
        out_specs=pl.BlockSpec((1, 2, c_out), lambda b, j, nt=nt: (b * nt + j, 0, 0)),
        out_shape=jax.ShapeDtypeStruct((batch * nt, 2, c_out), jnp.float32),
        compiler_params=_compiler_params(("parallel", "parallel")),
    )(x_flat, w1)


def _call_layer2(x_flat, w1, scale1, shift1, w2, batch, nt, tile, n_points, act_dtype):
    m_pad, c_in = x_flat.shape
    c_mid = w1.shape[1]
    c_out = w2.shape[1]
    masked = (nt * tile != n_points)
    kern = functools.partial(_l2_fused_kernel, tile=tile, n_points=n_points,
                             masked=masked)
    return pl.pallas_call(
        kern,
        grid=(batch, nt),
        in_specs=[
            pl.BlockSpec((tile, c_in), lambda b, j, nt=nt: (b * nt + j, 0)),
            pl.BlockSpec((c_in, c_mid), lambda b, j: (0, 0)),
            pl.BlockSpec((1, c_mid), lambda b, j: (0, 0)),
            pl.BlockSpec((1, c_mid), lambda b, j: (0, 0)),
            pl.BlockSpec((c_mid, c_out), lambda b, j: (0, 0)),
        ],
        out_specs=[
            pl.BlockSpec((tile, c_out), lambda b, j, nt=nt: (b * nt + j, 0)),
            pl.BlockSpec((1, 2, c_out), lambda b, j, nt=nt: (b * nt + j, 0, 0)),
        ],
        out_shape=[
            jax.ShapeDtypeStruct((m_pad, c_out), act_dtype),
            jax.ShapeDtypeStruct((batch * nt, 2, c_out), jnp.float32),
        ],
        compiler_params=_compiler_params(("parallel", "parallel")),
    )(x_flat, w1, scale1, shift1, w2)


def _call_mid(y_prev, scale, shift, w, batch, nt, tile, n_points, act_dtype):
    m_pad, c_in = y_prev.shape
    c_out = w.shape[1]
    masked = (nt * tile != n_points)
    kern = functools.partial(_mid_fused_kernel, tile=tile, n_points=n_points,
                             masked=masked)
    return pl.pallas_call(
        kern,
        grid=(batch, nt),
        in_specs=[
            pl.BlockSpec((tile, c_in), lambda b, j, nt=nt: (b * nt + j, 0)),
            pl.BlockSpec((1, c_in), lambda b, j: (0, 0)),
            pl.BlockSpec((1, c_in), lambda b, j: (0, 0)),
            pl.BlockSpec((c_in, c_out), lambda b, j: (0, 0)),
        ],
        out_specs=[
            pl.BlockSpec((tile, c_out), lambda b, j, nt=nt: (b * nt + j, 0)),
            pl.BlockSpec((1, 2, c_out), lambda b, j, nt=nt: (b * nt + j, 0, 0)),
        ],
        out_shape=[
            jax.ShapeDtypeStruct((m_pad, c_out), act_dtype),
            jax.ShapeDtypeStruct((batch * nt, 2, c_out), jnp.float32),
        ],
        compiler_params=_compiler_params(("parallel", "parallel")),
    )(y_prev, scale, shift, w)


def _call_final(y_prev, scale, shift, w, batch, nt, tile, n_points):
    m_pad, c_in = y_prev.shape
    c_out = w.shape[1]
    masked = (nt * tile != n_points)
    kern = functools.partial(_final_fused_kernel, tile=tile, n_points=n_points,
                             masked=masked)
    return pl.pallas_call(
        kern,
        grid=(batch, nt),
        in_specs=[
            pl.BlockSpec((tile, c_in), lambda b, j, nt=nt: (b * nt + j, 0)),
            pl.BlockSpec((1, c_in), lambda b, j: (0, 0)),
            pl.BlockSpec((1, c_in), lambda b, j: (0, 0)),
            pl.BlockSpec((c_in, c_out), lambda b, j: (0, 0)),
        ],
        out_specs=pl.BlockSpec((1, 4, c_out), lambda b, j, nt=nt: (b * nt + j, 0, 0)),
        out_shape=jax.ShapeDtypeStruct((batch * nt, 4, c_out), jnp.float32),
        compiler_params=_compiler_params(("parallel", "parallel")),
    )(y_prev, scale, shift, w)


def _fold_bn(stats, gamma, beta, n_rows):
    """Reduce (tiles, 2, C) partials; fold training-mode BN into (1, C) scale/shift."""
    s = jnp.sum(stats[:, 0, :], axis=0)
    ss = jnp.sum(stats[:, 1, :], axis=0)
    mean = s / n_rows
    var = jnp.maximum(ss / n_rows - mean * mean, 0.0)      # E[y^2] - mean^2, f32
    scale = gamma * jax.lax.rsqrt(var + _BN_EPS)
    shift = beta - mean * scale
    return scale[None, :], shift[None, :]


# ---------------------------------------------------------------------------
# full encoder
# ---------------------------------------------------------------------------
def pointnet_encoder(x, params, *, compute_dtype=jnp.bfloat16, tile_rows=2048):
    """x: (B, point_dim, N); params: 5 tuples (W[C_out, C_in], bias, gamma, beta).

    Returns (B, output_dim, 1), matching the PyTorch module in training mode
    (batch statistics).  `compute_dtype` sets the MXU operand / inter-layer
    activation storage dtype (bf16 default; statistics stay f32).
    """
    # TODO(synk): eval-mode BatchNorm (running stats + conv bias) is not implemented;
    # this mirrors the module's training-mode forward.
    b_sz, c_in, n_pts = x.shape
    n_layers = len(params)
    out_dim = params[-1][0].shape[0]
    m_rows = b_sz * n_pts                                   # true row count for BN stats

    dims = [c_in] + [w.shape[0] for (w, _, _, _) in params]
    pdims = [_pad_channels(c) for c in dims]

    nt, tile = _pick_tiling(n_pts, tile_rows)
    n_pad = nt * tile

    # NCW -> (B*N_pad, C_pad): points as rows, channels on the 128-lane axis.
    x_t = jnp.transpose(x, (0, 2, 1)).astype(jnp.float32)
    x_t = jnp.pad(x_t, ((0, 0), (0, n_pad - n_pts), (0, pdims[0] - c_in)))
    x_flat = x_t.reshape(b_sz * n_pad, pdims[0])

    weights, gammas, betas = [], [], []
    for li, (w, _bias, g, be) in enumerate(params):
        ci, co = dims[li], dims[li + 1]
        pci, pco = pdims[li], pdims[li + 1]
        wt = jnp.zeros((pci, pco), jnp.float32).at[:ci, :co].set(w.T.astype(jnp.float32))
        weights.append(wt.astype(compute_dtype))            # MXU operand dtype
        gammas.append(jnp.zeros((pco,), jnp.float32).at[:co].set(g.astype(jnp.float32)))
        betas.append(jnp.zeros((pco,), jnp.float32).at[:co].set(be.astype(jnp.float32)))
        # Conv bias `_bias` intentionally dropped: training-mode BN mean
        # subtraction cancels a per-channel bias exactly.

    # layer 1: stats-only pass over the tiny 8-lane x (y1 is never materialized)
    stats = _call_layer1(x_flat, weights[0], b_sz, nt, tile)
    scale, shift = _fold_bn(stats, gammas[0], betas[0], m_rows)

    # layer 2: recompute y1 in-kernel, folded BN1+ReLU, matmul with W2 (+ its stats)
    y, stats = _call_layer2(x_flat, weights[0], scale, shift, weights[1],
                            b_sz, nt, tile, n_pts, compute_dtype)
    scale, shift = _fold_bn(stats, gammas[1], betas[1], m_rows)

    # layers 3..4: folded BN+ReLU fused with the next matmul (+ its stats)
    for li in range(2, n_layers - 1):
        y, stats = _call_mid(y, scale, shift, weights[li],
                             b_sz, nt, tile, n_pts, compute_dtype)
        scale, shift = _fold_bn(stats, gammas[li], betas[li], m_rows)

    # layer 5 fused with the max-pool: per-tile [sum, ssq, max, min] of pre-BN y5
    pool = _call_final(y, scale, shift, weights[-1], b_sz, nt, tile, n_pts)
    scale5, shift5 = _fold_bn(pool[:, :2, :], gammas[-1], betas[-1], m_rows)

    pool = pool.reshape(b_sz, nt, 4, pdims[-1])
    ymax = jnp.max(pool[:, :, 2, :], axis=1)                # (B, C5_pad)
    ymin = jnp.min(pool[:, :, 3, :], axis=1)
    # BN is a per-channel affine and ReLU is monotone:
    #   max_n relu(s*y + t) = relu(s*max_y + t) if s >= 0 else relu(s*min_y + t)
    y_sel = jnp.where(scale5 >= 0.0, ymax, ymin)
    feat = jnp.maximum(y_sel * scale5 + shift5, 0.0)
    return feat[:, :out_dim, None]                          # (B, output_dim, 1)


# ---------------------------------------------------------------------------
# reference & test
# ---------------------------------------------------------------------------
def _reference_forward(x, params, compute_dtype=jnp.bfloat16):
    """Pure-JAX mirror of the PyTorch forward (training-mode BN), using the same
    matmul-operand dtype as the kernel (conv bias kept; it cancels under BN)."""
    b_sz, c_in, n_pts = x.shape
    h = jnp.transpose(x, (0, 2, 1)).reshape(b_sz * n_pts, c_in).astype(jnp.float32)
    for (w, b, g, be) in params:
        y = jnp.dot(h.astype(compute_dtype), w.T.astype(compute_dtype),
                    preferred_element_type=jnp.float32) + b[None, :]
        mean = jnp.mean(y, axis=0, keepdims=True)
        var = jnp.mean(jnp.square(y - mean), axis=0, keepdims=True)
        y = (y - mean) * jax.lax.rsqrt(var + _BN_EPS)
        h = jnp.maximum(y * g[None, :] + be[None, :], 0.0)
    h = h.reshape(b_sz, n_pts, -1)
    return jnp.max(h, axis=1)[..., None]


def _init_params(key, point_dim, output_dim):
    """Deterministic synthetic parameters mirroring the module's __init__ shapes."""
    dims = [point_dim, 64, 64, 64, 128, output_dim]
    params = []
    for i in range(5):
        c_in, c_out = dims[i], dims[i + 1]
        key, kw, kb, kg, kbe = jax.random.split(key, 5)
        w = jax.random.normal(kw, (c_out, c_in), jnp.float32) * 0.1   # Conv1d weight
        b = jax.random.normal(kb, (c_out,), jnp.float32) * 0.1        # Conv1d bias
        g = 1.0 + 0.1 * jax.random.normal(kg, (c_out,), jnp.float32)  # BN weight
        be = 0.1 * jax.random.normal(kbe, (c_out,), jnp.float32)      # BN bias
        params.append((w, b, g, be))
    return params


if __name__ == "__main__":
    B, POINT_DIM, OUTPUT_DIM = 2, 3, 256   # small stand-in for the module default 1024

    key = jax.random.PRNGKey(0)
    key, kx1, kx2 = jax.random.split(key, 3)
    params = _init_params(key, POINT_DIM, OUTPUT_DIM)

    # 1) production path: bf16 MXU operands + bf16 inter-layer activation storage
    N1 = 64
    x1 = jax.random.normal(kx1, (B, POINT_DIM, N1), jnp.float32)
    out_bf16 = jax.block_until_ready(pointnet_encoder(x1, params))
    ref_bf16 = jax.block_until_ready(_reference_forward(x1, params))
    assert out_bf16.shape == (B, OUTPUT_DIM, 1), out_bf16.shape
    err_bf16 = float(jnp.max(jnp.abs(out_bf16 - ref_bf16)))
    # bf16 operands + bf16 re-quantized intermediates accumulate rounding noise
    # over 5 layers; the tight correctness check is the f32 run below.
    assert err_bf16 < 1e-1, err_bf16

    # 2) f32 path on an awkward N (exercises the row-padding / masking branch)
    N2 = 50
    x2 = jax.random.normal(kx2, (B, POINT_DIM, N2), jnp.float32)
    out_f32 = jax.block_until_ready(
        pointnet_encoder(x2, params, compute_dtype=jnp.float32))
    ref_f32 = jax.block_until_ready(
        _reference_forward(x2, params, compute_dtype=jnp.float32))
    assert out_f32.shape == (B, OUTPUT_DIM, 1), out_f32.shape
    err_f32 = float(jnp.max(jnp.abs(out_f32 - ref_f32)))
    assert err_f32 < 5e-3, err_f32

    print("KERNEL_OK")
</pallas_src>

<mosaic_0001>
module attributes {stable_mosaic.version = 11 : i64} {
  func.func @_l1_stats_kernel(%arg0: i32, %arg1: i32, %arg2: memref<64x8xf32, #tpu.memory_space<vmem>>, %arg3: memref<8x128xbf16, #tpu.memory_space<vmem>>, %arg4: memref<1x2x128xf32, #tpu.memory_space<vmem>>) attributes {dimension_semantics = [#tpu.dimension_semantics<parallel>, #tpu.dimension_semantics<parallel>], iteration_bounds = array<i64: 2, 1>, scalar_prefetch = 0 : i64, scratch_operands = 0 : i64, tpu.core_type = #tpu.core_type<tc>, window_params = [{transform_indices = @transform_0, window_bounds = array<i64: 64, 8>}, {pipeline_mode = #tpu.pipeline_mode<synchronous>, transform_indices = @transform_1, window_bounds = array<i64: 8, 128>}, {transform_indices = @transform_2, window_bounds = array<i64: 1, 2, 128>}]} {
    %c0 = arith.constant 0 : index
    %c0_0 = arith.constant 0 : index
    %0 = vector.load %arg2[%c0, %c0_0] : memref<64x8xf32, #tpu.memory_space<vmem>>, vector<64x8xf32>
    %1 = arith.truncf %0 : vector<64x8xf32> to vector<64x8xbf16>
    %c0_1 = arith.constant 0 : index
    %c0_2 = arith.constant 0 : index
    %2 = vector.load %arg3[%c0_1, %c0_2] : memref<8x128xbf16, #tpu.memory_space<vmem>>, vector<8x128xbf16>
    %cst = arith.constant dense<0.000000e+00> : vector<64x128xf32>
    %3 = tpu.matmul %1, %2, %cst {dimension_numbers = #tpu.dot_dimension_numbers<[1], [0], [0], [1], [0, 0, 1, 1], [], []>} : vector<64x8xbf16>, vector<8x128xbf16>, vector<64x128xf32> -> vector<64x128xf32>
    %cst_3 = arith.constant dense<0.000000e+00> : vector<128xf32>
    %4 = vector.multi_reduction <add>, %3, %cst_3 [0] : vector<64x128xf32> to vector<128xf32>
    %5 = vector.shape_cast %4 : vector<128xf32> to vector<1x128xf32>
    %6 = arith.mulf %3, %3 : vector<64x128xf32>
    %cst_4 = arith.constant dense<0.000000e+00> : vector<128xf32>
    %7 = vector.multi_reduction <add>, %6, %cst_4 [0] : vector<64x128xf32> to vector<128xf32>
    %8 = vector.shape_cast %7 : vector<128xf32> to vector<1x128xf32>
    %9 = tpu.concatenate %5, %8 in 0 : vector<1x128xf32>, vector<1x128xf32> -> vector<2x128xf32>
    %10 = vector.shape_cast %9 : vector<2x128xf32> to vector<1x2x128xf32>
    %c0_5 = arith.constant 0 : index
    %c0_6 = arith.constant 0 : index
    %c0_7 = arith.constant 0 : index
    %11 = vector.load %arg4[%c0_5, %c0_6, %c0_7] : memref<1x2x128xf32, #tpu.memory_space<vmem>>, vector<1x2x128xf32>
    tpu.vector_store %arg4[%c0_5, %c0_6, %c0_7], %10 {strides = array<i32>} : memref<1x2x128xf32, #tpu.memory_space<vmem>>, vector<1x2x128xf32>,
    return
  }
  func.func @transform_0(%arg0: i32, %arg1: i32) -> (i32, i32) {
    %c1_i32 = arith.constant 1 : i32
    %0 = arith.muli %arg0, %c1_i32 : i32
    %1 = arith.addi %0, %arg1 : i32
    %c0_i32 = arith.constant 0 : i32
    %c0_i32_0 = arith.constant 0 : i32
    return %1, %c0_i32 : i32, i32
  }
  func.func @transform_1(%arg0: i32, %arg1: i32) -> (i32, i32) {
    %c0_i32 = arith.constant 0 : i32
    %c0_i32_0 = arith.constant 0 : i32
    %c0_i32_1 = arith.constant 0 : i32
    return %c0_i32, %c0_i32_0 : i32, i32
  }
  func.func @transform_2(%arg0: i32, %arg1: i32) -> (i32, i32, i32) {
    %c1_i32 = arith.constant 1 : i32
    %0 = arith.muli %arg0, %c1_i32 : i32
    %1 = arith.addi %0, %arg1 : i32
    %c0_i32 = arith.constant 0 : i32
    %c0_i32_0 = arith.constant 0 : i32
    %c0_i32_1 = arith.constant 0 : i32
    return %1, %c0_i32, %c0_i32_0 : i32, i32, i32
  }
}

</mosaic_0001>

<llo_original>
// kernel: tpu_custom_call.1
$region0: #{tpu_custom_call.1}
  #allocation0 [shape = 'u32[]', space=smem, size = 0x4, offset = 0x4, fixed_abs, tag = 'smem constant byte address 0x4 - core index']
  #allocation1 [shape = 'u32[72,128]{1,0:T(1,128)}', space=vmem, size = 0x9000, scoped, tag = 'internal scratch']
  %s0 = inlined_call_operand.vmem [shape: f32[128,8], index: 0, kind: input, shape index: {}]
  %s1 = inlined_call_operand.vmem [shape: bf16[8,128], index: 1, kind: input, shape index: {}]
  %s2 = inlined_call_operand.hbm [shape: f32[2,2,128], index: 2, kind: output, shape index: {}]
  %s3 = sld [smem:[#allocation0]]
  $region41: #{tpu_custom_call.1} parent=0
    _
  %s5 = ssub.s32 1, %s3
  %s6 = scalar_select 0, %s5, %s3
  $region1: #{tpu_custom_call.1} parent=0
    #allocation2 [shape = 'u8[2048]{0}', space=vmem, size = 0x800, scoped, tag = 'output window, operand 0']
    #allocation3 [shape = 's32[2]{0}', space=sflag, size = 0x8, scoped, tag = 'scoped memory for tpu_custom_call.1']
    %7 = vsyncpa [#allocation3], 0
    %s8 = scalar_lea.sflag [#allocation3], 1
    %9 = vsyncpa %s8, 0
    loop: start=0, step=1, limit=4
    $region2: #{tpu_custom_call.1} parent=1 // loop_pre_header
      _
    $region3: #{tpu_custom_call.1} parent=1 // loop_header
      %s11 = sphi 0, %s15
      %p12 = scmp.ge.s32.totalorder %s11, 4
      %s18 = sphi 0, %s30
      %s19 = sphi 0, %s26
      %s20 = sphi 0, %s18
      %s21 = sphi 0, %s19
      %s22 = sphi 0, %s20
      %s23 = sphi 0, %s21
      %s35 = sphi 0, %s37
      %s38 = sphi 0, %s35
      %s39 = sphi 0, %s38
      %s55 = sphi 0, %s39
      %s59 = sphi 0, %s59
      %s61 = sphi 0, %s59
      %s62 = sphi 0, %s61
      %s76 = sphi 0, %s62
      %s84 = sphi 0, %s86
      %s87 = sphi 0, %s84
      %s88 = sphi 0, %s87
      %s104 = sphi 0, %s88
    $region4: #{tpu_custom_call.1} parent=1 // loop_header_branch
      %14 = sbr.rel (%p12) target = $region8
    $region5: #{tpu_custom_call.1} parent=1 // loop_body
      %s16 = ssub.s32 %s11, 1
      %s17 = ssub.s32 %s11, 2
      %s24 = sadd.s32 1, %s19
      %p25 = scmp.ge.s32.totalorder %s24, 1
      %s26 = scalar_select %p25, 0, %s24
      %s27 = sadd.s32 1, %s18
      %s28 = scalar_select %p25, %s27, %s18
      %p29 = scmp.ge.s32.totalorder %s28, 2
      %s30 = scalar_select %p29, 0, %s28
      %s31 = sadd.s32 %s18, %s19
      %s32 = sadd.s32 %s30, %s26
      %s33 = ssub.s32 %s31, %s32
      %p34 = scmp.eq.s32.totalorder %s33, 0
      %s36 = sadd.s32 %s35, 1
      %s37 = scalar_select %p34, %s35, %s36
      %p40 = pneg %p34
      %p41 = scmp.eq.s32.totalorder %s11, 1
      %p42 = por %p40, %p41
      %p43 = scmp.ne.s32.totalorder %s35, %s38
      %p44 = scmp.eq.s32.totalorder %s11, 0
      %p45 = por %p43, %p44
      %p46 = scmp.ne.s32.totalorder %s35, %s38
      %p47 = scmp.eq.s32.totalorder %s16, 1
      %p48 = por %p46, %p47
      %p49 = scmp.ne.s32.totalorder %s38, %s39
      %p50 = scmp.eq.s32.totalorder %s16, 0
      %p51 = por %p49, %p50
      %p52 = scmp.ne.s32.totalorder %s38, %s39
      %p53 = scmp.eq.s32.totalorder %s17, 1
      %p54 = por %p52, %p53
      %p56 = scmp.ne.s32.totalorder %s39, %s55
      %p57 = scmp.eq.s32.totalorder %s17, 0
      %p58 = por %p56, %p57
      %s60 = sadd.s32 %s59, 1
      %p63 = scmp.eq.s32.totalorder %s11, 1
      %p64 = scmp.ne.s32.totalorder %s59, %s61
      %p65 = scmp.eq.s32.totalorder %s11, 0
      %p66 = por %p64, %p65
      %p67 = scmp.ne.s32.totalorder %s59, %s61
      %p68 = scmp.eq.s32.totalorder %s16, 1
      %p69 = por %p67, %p68
      %p70 = scmp.ne.s32.totalorder %s61, %s62
      %p71 = scmp.eq.s32.totalorder %s16, 0
      %p72 = por %p70, %p71
      %p73 = scmp.ne.s32.totalorder %s61, %s62
      %p74 = scmp.eq.s32.totalorder %s17, 1
      %p75 = por %p73, %p74
      %p77 = scmp.ne.s32.totalorder %s62, %s76
      %p78 = scmp.eq.s32.totalorder %s17, 0
      %p79 = por %p77, %p78
      %s80 = sadd.s32 %s18, %s19
      %s81 = sadd.s32 %s30, %s26
      %s82 = ssub.s32 %s80, %s81
      %p83 = scmp.eq.s32.totalorder %s82, 0
      %s85 = sadd.s32 %s84, 1
      %s86 = scalar_select %p83, %s84, %s85
      %p89 = pneg %p83
      %p90 = scmp.eq.s32.totalorder %s11, 1
      %p91 = por %p89, %p90
      %p92 = scmp.ne.s32.totalorder %s84, %s87
      %p93 = scmp.eq.s32.totalorder %s11, 0
      %p94 = por %p92, %p93
      %p95 = scmp.ne.s32.totalorder %s84, %s87
      %p96 = scmp.eq.s32.totalorder %s16, 1
      %p97 = por %p95, %p96
      %p98 = scmp.ne.s32.totalorder %s87, %s88
      %p99 = scmp.eq.s32.totalorder %s16, 0
      %p100 = por %p98, %p99
      %p101 = scmp.ne.s32.totalorder %s87, %s88
      %p102 = scmp.eq.s32.totalorder %s17, 1
      %p103 = por %p101, %p102
      %p105 = scmp.ne.s32.totalorder %s88, %s104
      %p106 = scmp.eq.s32.totalorder %s17, 0
      %p107 = por %p105, %p106
      %p108 = scmp.le.s32.totalorder 1, %s11
      %p109 = scmp.lt.s32.totalorder %s11, 3
      %p110 = pnand %p108, %p109
      %p111 = pneg %p110
      // Predicated region
      $region9: #{tpu_custom_call.1} parent=5 // pred_check
        _
      $region10: #{tpu_custom_call.1} parent=5 // pred_check_branch
        %113 = sbr.rel (%p110) target = $region12
      $region11: #{tpu_custom_call.1} parent=5 // pred_region
        %s114 = ssub.s32 %s11, 1
        // Predicated region
        $region13: #{tpu_custom_call.1} parent=11 // pred_check
          %p115 = pneg %p72
        $region14: #{tpu_custom_call.1} parent=11 // pred_check_branch
          %117 = sbr.rel (%p115) target = $region16
        $region15: #{tpu_custom_call.1} parent=11 // pred_region
          _
        $region16: #{tpu_custom_call.1} parent=11 // pred_fallthru
          _
      $region12: #{tpu_custom_call.1} parent=5 // pred_fallthru
        _
      %p118 = scmp.lt.s32.totalorder %s11, 2
      // Predicated region
      $region17: #{tpu_custom_call.1} parent=5 // pred_check
        %p119 = pneg %p118
      $region18: #{tpu_custom_call.1} parent=5 // pred_check_branch
        %121 = sbr.rel (%p119) target = $region20
      $region19: #{tpu_custom_call.1} parent=5 // pred_region
        // Predicated region
        $region21: #{tpu_custom_call.1} parent=19 // pred_check
          %p122 = pneg %p45
        $region22: #{tpu_custom_call.1} parent=19 // pred_check_branch
          %124 = sbr.rel (%p122) target = $region24
        $region23: #{tpu_custom_call.1} parent=19 // pred_region
          %s125 = sadd.s32 %s18, %s19
          %s126 = smul.u32 8, %s125
          %p127 = scmp.lt.s32.totalorder %s126, 15
          %s128 = scalar_select %p127, %s126, 15
          %s129 = smul.addr %s128, 8
          %s130 = scalar_lea.vmem %s0, %s129
          %s131 = sadd.s32 %s18, %s19
          %s132 = smul.u32 8, %s131
        $region24: #{tpu_custom_call.1} parent=19 // pred_fallthru
          _
      $region20: #{tpu_custom_call.1} parent=5 // pred_fallthru
        _
      %p133 = scmp.le.s32.totalorder 1, %s11
      %p134 = scmp.lt.s32.totalorder %s11, 3
      %p135 = pnand %p133, %p134
      %p136 = pneg %p135
      // Predicated region
      $region25: #{tpu_custom_call.1} parent=5 // pred_check
        _
      $region26: #{tpu_custom_call.1} parent=5 // pred_check_branch
        %138 = sbr.rel (%p135) target = $region28
      $region27: #{tpu_custom_call.1} parent=5 // pred_region
        %s139 = ssub.s32 %s11, 1
        %s140 = sadd.s32 %s20, %s21
        %s141 = smul.u32 8, %s140
        %p142 = scmp.lt.s32.totalorder %s141, 15
        %s143 = scalar_select %p142, %s141, 15
        %s144 = smul.addr %s143, 8
        %s145 = scalar_lea.vmem %s0, %s144
        %p146 = pneg %p51
        %p147 = pneg %p48
        %p148 = pneg %p72
        %p149 = pneg %p69
        %p150 = pneg %p100
        %p151 = pneg %p97
        %s152 = sand.u32 %s87, 1
        %s153 = scalar_lea.sflag [#allocation3], %s152
        %s154 = sand.u32 %s87, 1
        %s155 = smul.addr %s154, 2
        %s156 = scalar_lea.vmem [#allocation2], %s155
        %s157 = sadd.s32 %s20, %s21
        %s158 = smul.u32 8, %s157
        %p159 = scmp.lt.s32.totalorder %s158, 15
        %s160 = scalar_select %p159, %s158, 15
        %s161 = smul.addr %s160, 8
        %s162 = scalar_lea.vmem %s0, %s161
        %s163 = sadd.s32 %s20, %s21
        %s164 = smul.u32 8, %s163
        %s165 = sadd.s32 %s20, %s21
        %v167 = vld [vmem:[%s162] sm:$0xff]
        %v168 = vld [vmem:[%s162 + $0x8] sm:$0xff]
        %v169 = vld [vmem:[%s162 + $0x10] sm:$0xff]
        %v170 = vld [vmem:[%s162 + $0x18] sm:$0xff]
        %v171 = vld [vmem:[%s162 + $0x20] sm:$0xff]
        %v172 = vld [vmem:[%s162 + $0x28] sm:$0xff]
        %v173 = vld [vmem:[%s162 + $0x30] sm:$0xff]
        %v174 = vld [vmem:[%s162 + $0x38] sm:$0xff]
        %v175 = vpack.c.bf16 %v168, %v167
        %v176 = vpack.c.bf16 %v170, %v169
        %v177 = vpack.c.bf16 %v172, %v171
        %v178 = vpack.c.bf16 %v174, %v173
        %v179 = vld [vmem:[%s1] sm:$0xf]
        %vm180 = vcmask 64512
        %v182 = vsel %vm180, %v175, 0
        %v185 = vsel %vm180, %v176, 0
        %v188 = vsel %vm180, %v177, 0
        %v191 = vsel %vm180, %v178, 0
        %vm193 = vcmask 1043456
        %v195 = vsel %vm193, %v179, 0
        %197 = vmatpush.bf16.msra.mxu0 0
        %198 = vmatpush.bf16.msra.mxu0 0
        %199 = vmatpush.bf16.msra.mxu0 0
        %200 = vmatpush.bf16.msra.mxu0 0
        %201 = vmatpush.bf16.msra.mxu0 0
        %202 = vmatpush.bf16.msra.mxu0 0
        %203 = vmatpush.bf16.msra.mxu0 0
        %204 = vmatpush.bf16.msra.mxu0 %v195
        %205 = vmatmul.bf16.gmra.mxu0 %v182
        %v206 = vpop.f32.mrf.mxu0
        %v207 = vadd.f32 0.0, %v206
        %v208 = vpop.f32.mrf.mxu0
        %v209 = vadd.f32 0.0, %v208
        %210 = vmatmul.bf16.gmra.mxu0 %v185
        %v211 = vpop.f32.mrf.mxu0
        %v212 = vadd.f32 0.0, %v211
        %v213 = vpop.f32.mrf.mxu0
        %v214 = vadd.f32 0.0, %v213
        %215 = vmatmul.bf16.gmra.mxu0 %v188
        %v216 = vpop.f32.mrf.mxu0
        %v217 = vadd.f32 0.0, %v216
        %v218 = vpop.f32.mrf.mxu0
        %v219 = vadd.f32 0.0, %v218
        %220 = vmatmul.bf16.gmra.mxu0 %v191
        %v221 = vpop.f32.mrf.mxu0
        %v222 = vadd.f32 0.0, %v221
        %v223 = vpop.f32.mrf.mxu0
        %v224 = vadd.f32 0.0, %v223
        %225 = vdwg.mxu0
        %v226 = vadd.f32 %v207, %v209
        %v227 = vadd.f32 %v226, %v212
        %v228 = vadd.f32 %v227, %v214
        %v229 = vadd.f32 %v228, %v217
        %v230 = vadd.f32 %v229, %v219
        %v231 = vadd.f32 %v230, %v222
        %v232 = vadd.f32 %v231, %v224
        %v233 = vrot.slane %v232, 4
        %v234 = vadd.f32 %v232, %v233
        %v235 = vrot.slane %v234, 2
        %v236 = vadd.f32 %v234, %v235
        %v237 = vrot.slane %v236, 1
        %v238 = vadd.f32 %v236, %v237
        %v239 = vmul.f32 %v207, %v207
        %v240 = vmul.f32 %v209, %v209
        %v241 = vmul.f32 %v212, %v212
        %v242 = vmul.f32 %v214, %v214
        %v243 = vmul.f32 %v217, %v217
        %v244 = vmul.f32 %v219, %v219
        %v245 = vmul.f32 %v222, %v222
        %v246 = vmul.f32 %v224, %v224
        %v247 = vadd.f32 %v239, %v240
        %v248 = vadd.f32 %v247, %v241
        %v249 = vadd.f32 %v248, %v242
        %v250 = vadd.f32 %v249, %v243
        %v251 = vadd.f32 %v250, %v244
        %v252 = vadd.f32 %v251, %v245
        %v253 = vadd.f32 %v252, %v246
        %v254 = vrot.slane %v253, 4
        %v255 = vadd.f32 %v253, %v254
        %v256 = vrot.slane %v255, 2
        %v257 = vadd.f32 %v255, %v256
        %v258 = vrot.slane %v257, 1
        %v259 = vadd.f32 %v257, %v258
        %vm260 = vcmask 1040384
        %v261 = vsel %vm260, %v238, %v259
        %262 = vst [vmem:[%s156] sm:$0x3] %v261
        %s263 = sand.u32 %s87, 1
        %s264 = scalar_lea.sflag [#allocation3], %s263
        %s265 = sand.u32 %s87, 1
        %s266 = smul.addr %s265, 2
        %s267 = scalar_lea.vmem [#allocation2], %s266
        // Predicated region
        $region29: #{tpu_custom_call.1} parent=27 // pred_check
          %p268 = pneg %p97
        $region30: #{tpu_custom_call.1} parent=27 // pred_check_branch
          %270 = sbr.rel (%p268) target = $region32
        $region31: #{tpu_custom_call.1} parent=27 // pred_region
          %s271 = sadd.s32 %s20, %s21
          %273 = vsyncadd %s264, 0
          %s274 = smul.addr %s271, 2
          %s275 = scalar_lea.hbm %s2, %s274
          %s277 = sshll.u32 %s267, 4
          %s278 = int_to_ptr.vmem [resolvable:$true] %s277
          %s279 = sshll.u32 %s275, 4
          %s280 = int_to_ptr.hbm [resolvable:$true] %s279
          %282 = dma.vmem_to_hbm [thread:$0]  %s278, 32, %s280, %s264
        $region32: #{tpu_custom_call.1} parent=27 // pred_fallthru
          _
      $region28: #{tpu_custom_call.1} parent=5 // pred_fallthru
        _
      %p283 = scmp.le.s32.totalorder 2, %s11
      // Predicated region
      $region33: #{tpu_custom_call.1} parent=5 // pred_check
        %p284 = pneg %p283
      $region34: #{tpu_custom_call.1} parent=5 // pred_check_branch
        %286 = sbr.rel (%p284) target = $region36
      $region35: #{tpu_custom_call.1} parent=5 // pred_region
        %s287 = ssub.s32 %s11, 2
        // Predicated region
        $region37: #{tpu_custom_call.1} parent=35 // pred_check
          %p288 = pneg %p103
        $region38: #{tpu_custom_call.1} parent=35 // pred_check_branch
          %290 = sbr.rel (%p288) target = $region40
        $region39: #{tpu_custom_call.1} parent=35 // pred_region
          %s291 = sand.u32 %s88, 1
          %s292 = scalar_lea.sflag [#allocation3], %s291
          %s293 = sand.u32 %s88, 1
          %s294 = smul.addr %s293, 2
          %s295 = scalar_lea.vmem [#allocation2], %s294
          %297 = dma.done %s292, 32
        $region40: #{tpu_custom_call.1} parent=35 // pred_fallthru
          _
      $region36: #{tpu_custom_call.1} parent=5 // pred_fallthru
        _
    $region6: #{tpu_custom_call.1} parent=1 // loop_footer
      %s15 = sadd.s32 1, %s11
    $region7: #{tpu_custom_call.1} parent=1 // loop_footer_branch
      %10 = sbr.rel target = $region3
    $region8: #{tpu_custom_call.1} parent=1 // loop_exit
      _
    %298 = vsyncpa [#allocation3], 1
    %s299 = scalar_lea.sflag [#allocation3], 1
    %300 = vsyncpa %s299, 1

</llo_original>
